<compile_context>
chip_gen: v6e
topology: v6e:2x2x1
jax: 0.10.0
libtpu: 0.0.40
codegen_flags: <defaults>
</compile_context>

<pallas_src>
import functools

import jax
import jax.numpy as jnp
from jax import lax
from jax.experimental import pallas as pl
from jax.experimental.pallas import tpu as pltpu


def _cutout_kernel(rects_ref, x_ref, o_ref, *, num_regions, block_b):
    # rects_ref: SMEM int32, flat (B * R * 4,) = [x0, wx, y0, wy] per (batch, region)
    # x_ref / o_ref: VMEM block (block_b, F, T) for the current group of batch rows.
    gb = pl.program_id(0)
    _, F, T = x_ref.shape

    # Separable index vectors (cheap: (F,1) and (1,T) instead of two (F,T) planes).
    row_idx = lax.broadcasted_iota(jnp.int32, (F, 1), 0)  # freq index
    col_idx = lax.broadcasted_iota(jnp.int32, (1, T), 1)  # time index

    for j in range(block_b):  # block_b is small & static -> fully unrolled
        base = (gb * block_b + j) * (num_regions * 4)
        mask = jnp.zeros((F, T), dtype=jnp.bool_)
        for i in range(num_regions):  # num_regions is small & static -> unrolled
            off = base + i * 4
            x0 = rects_ref[off + 0]
            wx = rects_ref[off + 1]
            y0 = rects_ref[off + 2]
            wy = rects_ref[off + 3]
            rmask = (row_idx >= x0) & (row_idx < x0 + wx)  # (F, 1)
            cmask = (col_idx >= y0) & (col_idx < y0 + wy)  # (1, T)
            mask = mask | (rmask & cmask)                  # broadcast -> (F, T)
        xb = x_ref[j]
        # masked_fill(mask, 0) with a scalar zero (no full-tile zero broadcast).
        o_ref[j] = jnp.where(mask, jnp.zeros((), xb.dtype), xb)


def _pick_block_batch(B, F, T, itemsize, target_bytes=2 << 20):
    """Largest divisor of B giving a per-step tile near `target_bytes`, while
    keeping >= 2 grid steps when B >= 2 (v7x has 2 TensorCores)."""
    per_elem = max(1, F * T * itemsize)
    want = max(1, target_bytes // per_elem)
    if B >= 2:
        want = min(want, max(1, B // 2))
    else:
        want = 1
    bb = 1
    for d in range(1, B + 1):
        if B % d == 0 and d <= want:
            bb = d
    return bb


def spec_cutout_regions(x, rects_flat, num_regions):
    """x: (B, F, T); rects_flat: int32 (B*num_regions*4,)."""
    B, F, T = x.shape
    if num_regions == 0:
        return x  # cfg default cutout_rect_regions=0 -> identity

    block_b = _pick_block_batch(B, F, T, x.dtype.itemsize)
    grid = (B // block_b,)

    kernel = functools.partial(_cutout_kernel, num_regions=num_regions,
                               block_b=block_b)
    return pl.pallas_call(
        kernel,
        out_shape=jax.ShapeDtypeStruct(x.shape, x.dtype),
        grid_spec=pltpu.PrefetchScalarGridSpec(
            num_scalar_prefetch=1,
            grid=grid,
            in_specs=[pl.BlockSpec((block_b, F, T), lambda b, rects: (b, 0, 0))],
            out_specs=pl.BlockSpec((block_b, F, T), lambda b, rects: (b, 0, 0)),
        ),
        compiler_params=pltpu.CompilerParams(
            dimension_semantics=("parallel",),
            vmem_limit_bytes=48 * 1024 * 1024,  # fits v7x's 64 MiB physical VMEM
        ),
    )(rects_flat, x)


def sample_rects(key, batch, num_regions, F, T, rect_time, rect_freq):
    """Deterministic stand-in for the torch module's random.uniform draws.

    Mirrors the torch code exactly:
        x0 = int(uniform(0, F - rect_freq));  wx = int(uniform(0, rect_time))
        y0 = int(uniform(0, T - rect_time));  wy = int(uniform(0, rect_freq))
    Offsets/widths are clamped to stay valid when F <= rect_freq etc.
    """
    keys = jax.random.split(key, 4)
    shape = (batch, num_regions)
    hi_x0 = float(max(F - rect_freq, 1))
    hi_y0 = float(max(T - rect_time, 1))
    hi_wx = float(max(rect_time, 1))
    hi_wy = float(max(rect_freq, 1))
    x0 = jnp.floor(jax.random.uniform(keys[0], shape, maxval=hi_x0)).astype(jnp.int32)
    y0 = jnp.floor(jax.random.uniform(keys[1], shape, maxval=hi_y0)).astype(jnp.int32)
    wx = jnp.floor(jax.random.uniform(keys[2], shape, maxval=hi_wx)).astype(jnp.int32)
    wy = jnp.floor(jax.random.uniform(keys[3], shape, maxval=hi_wy)).astype(jnp.int32)
    rects = jnp.stack([x0, wx, y0, wy], axis=-1)  # (B, R, 4)
    return rects.reshape(-1)


def _reference(x, rects_flat, num_regions):
    """Pure-JAX reference mirroring the torch loop semantics."""
    B, F, T = x.shape
    rects = jax.device_get(rects_flat).reshape(B, num_regions, 4)
    rows = jnp.arange(F)[:, None]
    cols = jnp.arange(T)[None, :]
    outs = []
    for b in range(B):
        mask = jnp.zeros((F, T), dtype=bool)
        for i in range(num_regions):
            x0, wx, y0, wy = (int(rects[b, i, k]) for k in range(4))
            m = (rows >= x0) & (rows < x0 + wx) & (cols >= y0) & (cols < y0 + wy)
            mask = mask | m
        outs.append(jnp.where(mask, jnp.zeros_like(x[b]), x[b]))
    return jnp.stack(outs)


if __name__ == "__main__":
    # cfg (the torch module's __init__ knobs)
    cutout_rect_regions = 2
    cutout_rect_time = 5
    cutout_rect_freq = 20

    B, F, T = 2, 64, 128  # (batch, freq, time) spectrogram-like input
    key = jax.random.PRNGKey(0)
    kx, kr = jax.random.split(key)
    x = jax.random.normal(kx, (B, F, T), dtype=jnp.float32)
    rects_flat = sample_rects(kr, B, cutout_rect_regions, F, T,
                              cutout_rect_time, cutout_rect_freq)

    out = spec_cutout_regions(x, rects_flat, cutout_rect_regions)
    out = jax.block_until_ready(out)

    ref = _reference(x, rects_flat, cutout_rect_regions)
    assert out.shape == x.shape and out.dtype == x.dtype
    assert bool(jnp.array_equal(out, ref)), "Pallas output mismatch vs reference"
    print("KERNEL_OK")
</pallas_src>

<mosaic_0001>
module attributes {stable_mosaic.version = 11 : i64} {
  func.func @_cutout_kernel(%arg0: i32, %arg1: memref<16xi32, #tpu.memory_space<smem>>, %arg2: memref<1x64x128xf32, #tpu.memory_space<vmem>>, %arg3: memref<1x64x128xf32, #tpu.memory_space<vmem>>) attributes {dimension_semantics = [#tpu.dimension_semantics<parallel>], iteration_bounds = array<i64: 2>, scalar_prefetch = 1 : i64, scratch_operands = 0 : i64, tpu.core_type = #tpu.core_type<tc>, window_params = [{transform_indices = @transform_0, window_bounds = array<i64: 1, 64, 128>}, {transform_indices = @transform_1, window_bounds = array<i64: 1, 64, 128>}]} {
    %0 = tpu.iota {dimensions = array<i32: 0>} : vector<64x1xi32>
    %1 = tpu.iota {dimensions = array<i32: 1>} : vector<1x128xi32>
    %c1_i32 = arith.constant 1 : i32
    %2 = arith.muli %arg0, %c1_i32 : i32
    %c0_i32 = arith.constant 0 : i32
    %3 = arith.addi %2, %c0_i32 : i32
    %c8_i32 = arith.constant 8 : i32
    %4 = arith.muli %3, %c8_i32 : i32
    %false = arith.constant false
    %5 = vector.broadcast %false : i1 to vector<64x128xi1>
    %c0_i32_0 = arith.constant 0 : i32
    %6 = arith.addi %4, %c0_i32_0 : i32
    %c0_i32_1 = arith.constant 0 : i32
    %7 = arith.addi %6, %c0_i32_1 : i32
    %8 = arith.index_cast %7 : i32 to index
    %9 = memref.load %arg1[%8] : memref<16xi32, #tpu.memory_space<smem>>
    %c1_i32_2 = arith.constant 1 : i32
    %10 = arith.addi %6, %c1_i32_2 : i32
    %11 = arith.index_cast %10 : i32 to index
    %12 = memref.load %arg1[%11] : memref<16xi32, #tpu.memory_space<smem>>
    %c2_i32 = arith.constant 2 : i32
    %13 = arith.addi %6, %c2_i32 : i32
    %14 = arith.index_cast %13 : i32 to index
    %15 = memref.load %arg1[%14] : memref<16xi32, #tpu.memory_space<smem>>
    %c3_i32 = arith.constant 3 : i32
    %16 = arith.addi %6, %c3_i32 : i32
    %17 = arith.index_cast %16 : i32 to index
    %18 = memref.load %arg1[%17] : memref<16xi32, #tpu.memory_space<smem>>
    %19 = vector.broadcast %9 : i32 to vector<64x1xi32>
    %20 = arith.cmpi sge, %0, %19 : vector<64x1xi32>
    %21 = arith.addi %9, %12 : i32
    %22 = vector.broadcast %21 : i32 to vector<64x1xi32>
    %23 = arith.cmpi slt, %0, %22 : vector<64x1xi32>
    %24 = arith.andi %20, %23 : vector<64x1xi1>
    %25 = vector.broadcast %15 : i32 to vector<1x128xi32>
    %26 = arith.cmpi sge, %1, %25 : vector<1x128xi32>
    %27 = arith.addi %15, %18 : i32
    %28 = vector.broadcast %27 : i32 to vector<1x128xi32>
    %29 = arith.cmpi slt, %1, %28 : vector<1x128xi32>
    %30 = arith.andi %26, %29 : vector<1x128xi1>
    %31 = vector.broadcast %24 : vector<64x1xi1> to vector<64x128xi1>
    %32 = vector.broadcast %30 : vector<1x128xi1> to vector<64x128xi1>
    %33 = arith.andi %31, %32 : vector<64x128xi1>
    %34 = arith.ori %5, %33 : vector<64x128xi1>
    %c4_i32 = arith.constant 4 : i32
    %35 = arith.addi %4, %c4_i32 : i32
    %c0_i32_3 = arith.constant 0 : i32
    %36 = arith.addi %35, %c0_i32_3 : i32
    %37 = arith.index_cast %36 : i32 to index
    %38 = memref.load %arg1[%37] : memref<16xi32, #tpu.memory_space<smem>>
    %c1_i32_4 = arith.constant 1 : i32
    %39 = arith.addi %35, %c1_i32_4 : i32
    %40 = arith.index_cast %39 : i32 to index
    %41 = memref.load %arg1[%40] : memref<16xi32, #tpu.memory_space<smem>>
    %c2_i32_5 = arith.constant 2 : i32
    %42 = arith.addi %35, %c2_i32_5 : i32
    %43 = arith.index_cast %42 : i32 to index
    %44 = memref.load %arg1[%43] : memref<16xi32, #tpu.memory_space<smem>>
    %c3_i32_6 = arith.constant 3 : i32
    %45 = arith.addi %35, %c3_i32_6 : i32
    %46 = arith.index_cast %45 : i32 to index
    %47 = memref.load %arg1[%46] : memref<16xi32, #tpu.memory_space<smem>>
    %48 = vector.broadcast %38 : i32 to vector<64x1xi32>
    %49 = arith.cmpi sge, %0, %48 : vector<64x1xi32>
    %50 = arith.addi %38, %41 : i32
    %51 = vector.broadcast %50 : i32 to vector<64x1xi32>
    %52 = arith.cmpi slt, %0, %51 : vector<64x1xi32>
    %53 = arith.andi %49, %52 : vector<64x1xi1>
    %54 = vector.broadcast %44 : i32 to vector<1x128xi32>
    %55 = arith.cmpi sge, %1, %54 : vector<1x128xi32>
    %56 = arith.addi %44, %47 : i32
    %57 = vector.broadcast %56 : i32 to vector<1x128xi32>
    %58 = arith.cmpi slt, %1, %57 : vector<1x128xi32>
    %59 = arith.andi %55, %58 : vector<1x128xi1>
    %60 = vector.broadcast %53 : vector<64x1xi1> to vector<64x128xi1>
    %61 = vector.broadcast %59 : vector<1x128xi1> to vector<64x128xi1>
    %62 = arith.andi %60, %61 : vector<64x128xi1>
    %63 = arith.ori %34, %62 : vector<64x128xi1>
    %c0 = arith.constant 0 : index
    %c0_7 = arith.constant 0 : index
    %c0_8 = arith.constant 0 : index
    %64 = vector.load %arg2[%c0, %c0_7, %c0_8] : memref<1x64x128xf32, #tpu.memory_space<vmem>>, vector<1x64x128xf32>
    %65 = vector.shape_cast %64 : vector<1x64x128xf32> to vector<64x128xf32>
    %cst = arith.constant 0.000000e+00 : f32
    %66 = vector.broadcast %cst : f32 to vector<64x128xf32>
    %67 = arith.select %63, %66, %65 : vector<64x128xi1>, vector<64x128xf32>
    %c0_9 = arith.constant 0 : index
    %c0_10 = arith.constant 0 : index
    %c0_11 = arith.constant 0 : index
    %68 = vector.load %arg3[%c0_9, %c0_10, %c0_11] : memref<1x64x128xf32, #tpu.memory_space<vmem>>, vector<1x64x128xf32>
    %69 = vector.shape_cast %68 : vector<1x64x128xf32> to vector<64x128xf32>
    %70 = vector.shape_cast %67 : vector<64x128xf32> to vector<1x64x128xf32>
    tpu.vector_store %arg3[%c0_9, %c0_10, %c0_11], %70 {strides = array<i32>} : memref<1x64x128xf32, #tpu.memory_space<vmem>>, vector<1x64x128xf32>,
    return
  }
  func.func @transform_0(%arg0: i32, %arg1: memref<16xi32, #tpu.memory_space<smem>>) -> (i32, i32, i32) {
    %c0_i32 = arith.constant 0 : i32
    %c0_i32_0 = arith.constant 0 : i32
    %c0_i32_1 = arith.constant 0 : i32
    return %arg0, %c0_i32, %c0_i32_0 : i32, i32, i32
  }
  func.func @transform_1(%arg0: i32, %arg1: memref<16xi32, #tpu.memory_space<smem>>) -> (i32, i32, i32) {
    %c0_i32 = arith.constant 0 : i32
    %c0_i32_0 = arith.constant 0 : i32
    %c0_i32_1 = arith.constant 0 : i32
    return %arg0, %c0_i32, %c0_i32_0 : i32, i32, i32
  }
}

</mosaic_0001>

<llo_original>
// kernel: tpu_custom_call.1
$region0: #{tpu_custom_call.1}
  #allocation0 [shape = 'u32[]', space=smem, size = 0x4, offset = 0x4, fixed_abs, tag = 'smem constant byte address 0x4 - core index']
  #allocation1 [shape = 'u32[144,128]{1,0:T(1,128)}', space=vmem, size = 0x12000, scoped, tag = 'internal scratch']
  #allocation2 [shape = 's32[1]{0}', space=sflag, size = 0x4, scoped, tag = 'scoped memory for tpu_custom_call.1']
  #allocation3 [shape = 'u8[512]{0}', space=smem, size = 0x200, scoped, tag = 'prefetched SMEM operand 0']
  %s0 = inlined_call_operand.hbm [shape: s32[16], index: 0, kind: input, shape index: {}]
  %s1 = inlined_call_operand.hbm [shape: f32[2,64,128], index: 1, kind: input, shape index: {}]
  %s2 = inlined_call_operand.hbm [shape: f32[2,64,128], index: 2, kind: output, shape index: {}]
  %s3 = sld [smem:[#allocation0]]
  $region41: #{tpu_custom_call.1} parent=0
    _
  %s5 = ssub.s32 1, %s3
  %s6 = scalar_select 0, %s5, %s3
  %8 = dma.hbm_to_smem %s0, 16, [#allocation3], [#allocation2]
  %9 = dma.done [#allocation2], 16
  %10 = sfence
  $region1: #{tpu_custom_call.1} parent=0
    #allocation4 [shape = 'u8[65536]{0}', space=vmem, size = 0x10000, scoped, tag = 'input window, operand 1']
    #allocation5 [shape = 's32[2]{0}', space=sflag, size = 0x8, scoped, tag = 'scoped memory for tpu_custom_call.1']
    #allocation6 [shape = 's32[2]{0}', space=sflag, size = 0x8, scoped, tag = 'scoped memory for tpu_custom_call.1']
    #allocation7 [shape = 'u8[65536]{0}', space=vmem, size = 0x10000, scoped, tag = 'output window, operand 0']
    %11 = vsyncpa [#allocation5], 0
    %s12 = scalar_lea.sflag [#allocation5], 1
    %13 = vsyncpa %s12, 0
    %14 = vsyncpa [#allocation6], 0
    %s15 = scalar_lea.sflag [#allocation6], 1
    %16 = vsyncpa %s15, 0
    loop: start=0, step=1, limit=4
    $region2: #{tpu_custom_call.1} parent=1 // loop_pre_header
      _
    $region3: #{tpu_custom_call.1} parent=1 // loop_header
      %s18 = sphi 0, %s22
      %p19 = scmp.ge.s32.totalorder %s18, 4
      %s28 = sphi 0, %s30
      %s31 = sphi 0, %s28
      %s32 = sphi 0, %s31
      %s48 = sphi 0, %s32
      %s54 = sphi 0, %s56
      %s57 = sphi 0, %s54
      %s58 = sphi 0, %s57
      %s74 = sphi 0, %s58
    $region4: #{tpu_custom_call.1} parent=1 // loop_header_branch
      %21 = sbr.rel (%p19) target = $region8
    $region5: #{tpu_custom_call.1} parent=1 // loop_body
      %s23 = ssub.s32 %s18, 1
      %s24 = ssub.s32 %s18, 2
      %s25 = sadd.s32 %s18, 1
      %s26 = ssub.s32 %s18, %s25
      %p27 = scmp.eq.s32.totalorder %s26, 0
      %s29 = sadd.s32 %s28, 1
      %s30 = scalar_select %p27, %s28, %s29
      %p33 = pneg %p27
      %p34 = scmp.eq.s32.totalorder %s18, 1
      %p35 = por %p33, %p34
      %p36 = scmp.ne.s32.totalorder %s28, %s31
      %p37 = scmp.eq.s32.totalorder %s18, 0
      %p38 = por %p36, %p37
      %p39 = scmp.ne.s32.totalorder %s28, %s31
      %p40 = scmp.eq.s32.totalorder %s23, 1
      %p41 = por %p39, %p40
      %p42 = scmp.ne.s32.totalorder %s31, %s32
      %p43 = scmp.eq.s32.totalorder %s23, 0
      %p44 = por %p42, %p43
      %p45 = scmp.ne.s32.totalorder %s31, %s32
      %p46 = scmp.eq.s32.totalorder %s24, 1
      %p47 = por %p45, %p46
      %p49 = scmp.ne.s32.totalorder %s32, %s48
      %p50 = scmp.eq.s32.totalorder %s24, 0
      %p51 = por %p49, %p50
      %s52 = ssub.s32 %s18, %s25
      %p53 = scmp.eq.s32.totalorder %s52, 0
      %s55 = sadd.s32 %s54, 1
      %s56 = scalar_select %p53, %s54, %s55
      %p59 = pneg %p53
      %p60 = scmp.eq.s32.totalorder %s18, 1
      %p61 = por %p59, %p60
      %p62 = scmp.ne.s32.totalorder %s54, %s57
      %p63 = scmp.eq.s32.totalorder %s18, 0
      %p64 = por %p62, %p63
      %p65 = scmp.ne.s32.totalorder %s54, %s57
      %p66 = scmp.eq.s32.totalorder %s23, 1
      %p67 = por %p65, %p66
      %p68 = scmp.ne.s32.totalorder %s57, %s58
      %p69 = scmp.eq.s32.totalorder %s23, 0
      %p70 = por %p68, %p69
      %p71 = scmp.ne.s32.totalorder %s57, %s58
      %p72 = scmp.eq.s32.totalorder %s24, 1
      %p73 = por %p71, %p72
      %p75 = scmp.ne.s32.totalorder %s58, %s74
      %p76 = scmp.eq.s32.totalorder %s24, 0
      %p77 = por %p75, %p76
      %p78 = scmp.le.s32.totalorder 1, %s18
      %p79 = scmp.lt.s32.totalorder %s18, 3
      %p80 = pnand %p78, %p79
      %p81 = pneg %p80
      // Predicated region
      $region9: #{tpu_custom_call.1} parent=5 // pred_check
        _
      $region10: #{tpu_custom_call.1} parent=5 // pred_check_branch
        %83 = sbr.rel (%p80) target = $region12
      $region11: #{tpu_custom_call.1} parent=5 // pred_region
        %s84 = ssub.s32 %s18, 1
      $region12: #{tpu_custom_call.1} parent=5 // pred_fallthru
        _
      %p85 = scmp.lt.s32.totalorder %s18, 2
      // Predicated region
      $region13: #{tpu_custom_call.1} parent=5 // pred_check
        %p86 = pneg %p85
      $region14: #{tpu_custom_call.1} parent=5 // pred_check_branch
        %88 = sbr.rel (%p86) target = $region16
      $region15: #{tpu_custom_call.1} parent=5 // pred_region
        // Predicated region
        $region17: #{tpu_custom_call.1} parent=15 // pred_check
          %p89 = pneg %p38
        $region18: #{tpu_custom_call.1} parent=15 // pred_check_branch
          %91 = sbr.rel (%p89) target = $region20
        $region19: #{tpu_custom_call.1} parent=15 // pred_region
          %s92 = sand.u32 %s28, 1
          %s93 = scalar_lea.sflag [#allocation5], %s92
          %s94 = sand.u32 %s28, 1
          %s95 = smul.addr %s94, 64
          %s96 = scalar_lea.vmem [#allocation4], %s95
          %s98 = ssub.s32 1024, 1024
          %99 = vsyncadd %s93, %s98
          %s100 = smul.addr %s18, 8
          %s101 = smul.addr %s100, 128
          %s102 = scalar_lea.hbm %s1, %s101
          %s103 = sshll.u32 %s96, 4
          %s104 = int_to_ptr.vmem [resolvable:$true] %s103
          %109 = dma.hbm_to_vmem [thread:$0]  %s102, 1024, %s104, %s93, 128, 128, 8
        $region20: #{tpu_custom_call.1} parent=15 // pred_fallthru
          _
      $region16: #{tpu_custom_call.1} parent=5 // pred_fallthru
        _
      %p110 = scmp.le.s32.totalorder 1, %s18
      %p111 = scmp.lt.s32.totalorder %s18, 3
      %p112 = pnand %p110, %p111
      %p113 = pneg %p112
      // Predicated region
      $region21: #{tpu_custom_call.1} parent=5 // pred_check
        _
      $region22: #{tpu_custom_call.1} parent=5 // pred_check_branch
        %115 = sbr.rel (%p112) target = $region24
      $region23: #{tpu_custom_call.1} parent=5 // pred_region
        %s116 = ssub.s32 %s18, 1
        %s117 = sand.u32 %s31, 1
        %s118 = scalar_lea.sflag [#allocation5], %s117
        %s119 = sand.u32 %s31, 1
        %s120 = smul.addr %s119, 64
        %s121 = scalar_lea.vmem [#allocation4], %s120
        // Predicated region
        $region25: #{tpu_custom_call.1} parent=23 // pred_check
          %p122 = pneg %p44
        $region26: #{tpu_custom_call.1} parent=23 // pred_check_branch
          %124 = sbr.rel (%p122) target = $region28
        $region27: #{tpu_custom_call.1} parent=23 // pred_region
          %125 = dma.done %s118, 1024
        $region28: #{tpu_custom_call.1} parent=23 // pred_fallthru
          _
        %s126 = sand.u32 %s31, 1
        %s127 = scalar_lea.sflag [#allocation5], %s126
        %s128 = sand.u32 %s31, 1
        %s129 = smul.addr %s128, 64
        %s130 = scalar_lea.vmem [#allocation4], %s129
        %p131 = pneg %p44
        %p132 = pneg %p41
        %p133 = pneg %p70
        %p134 = pneg %p67
        %s135 = sand.u32 %s57, 1
        %s136 = scalar_lea.sflag [#allocation6], %s135
        %s137 = sand.u32 %s57, 1
        %s138 = smul.addr %s137, 64
        %s139 = scalar_lea.vmem [#allocation7], %s138
        %v140 = vlaneseq
        %v141 = vshrl.u32 %v140, 7
        %v142 = vadd.s32 %v141, 8
        %v143 = vadd.s32 %v141, 16
        %v144 = vadd.s32 %v141, 24
        %v145 = vadd.s32 %v141, 32
        %v146 = vadd.s32 %v141, 40
        %v147 = vadd.s32 %v141, 48
        %v148 = vadd.s32 %v141, 56
        %v149 = vlaneseq
        %v150 = vand.u32 %v149, 127
        %s151 = smul.u32 %s23, 8
        %s152 = sld [smem:[#allocation3 + %s151]]
        %s153 = sadd.s32 %s151, 1
        %s154 = sld [smem:[#allocation3 + %s153]]
        %s155 = sadd.s32 %s151, 2
        %s156 = sld [smem:[#allocation3 + %s155]]
        %s157 = sadd.s32 %s151, 3
        %s158 = sld [smem:[#allocation3 + %s157]]
        %v159 = vstv %s152
        %vm160 = vcmp.ge.s32.totalorder %v141, %v159
        %vm161 = vcmp.ge.s32.totalorder %v142, %v159
        %vm162 = vcmp.ge.s32.totalorder %v143, %v159
        %vm163 = vcmp.ge.s32.totalorder %v144, %v159
        %vm164 = vcmp.ge.s32.totalorder %v145, %v159
        %vm165 = vcmp.ge.s32.totalorder %v146, %v159
        %vm166 = vcmp.ge.s32.totalorder %v147, %v159
        %vm167 = vcmp.ge.s32.totalorder %v148, %v159
        %s168 = sadd.s32 %s152, %s154
        %v169 = vstv %s168
        %vm170 = vcmp.lt.s32.totalorder %v141, %v169
        %vm171 = vcmp.lt.s32.totalorder %v142, %v169
        %vm172 = vcmp.lt.s32.totalorder %v143, %v169
        %vm173 = vcmp.lt.s32.totalorder %v144, %v169
        %vm174 = vcmp.lt.s32.totalorder %v145, %v169
        %vm175 = vcmp.lt.s32.totalorder %v146, %v169
        %vm176 = vcmp.lt.s32.totalorder %v147, %v169
        %vm177 = vcmp.lt.s32.totalorder %v148, %v169
        %vm178 = vmand %vm160, %vm170
        %vm179 = vmand %vm161, %vm171
        %vm180 = vmand %vm162, %vm172
        %vm181 = vmand %vm163, %vm173
        %vm182 = vmand %vm164, %vm174
        %vm183 = vmand %vm165, %vm175
        %vm184 = vmand %vm166, %vm176
        %vm185 = vmand %vm167, %vm177
        %v186 = vstv %s156
        %vm187 = vcmp.ge.s32.totalorder %v150, %v186
        %s188 = sadd.s32 %s156, %s158
        %v189 = vstv %s188
        %vm190 = vcmp.lt.s32.totalorder %v150, %v189
        %vm191 = vmand %vm187, %vm190
        %v192 = vsel %vm178, 1, 0
        %v193 = vsel %vm179, 1, 0
        %v194 = vsel %vm180, 1, 0
        %v195 = vsel %vm181, 1, 0
        %v196 = vsel %vm182, 1, 0
        %v197 = vsel %vm183, 1, 0
        %v198 = vsel %vm184, 1, 0
        %v199 = vsel %vm185, 1, 0
        %vm200 = vcmp.eq.s32.totalorder %v192, 1
        %vm201 = vcmp.eq.s32.totalorder %v193, 1
        %vm202 = vcmp.eq.s32.totalorder %v194, 1
        %vm203 = vcmp.eq.s32.totalorder %v195, 1
        %vm204 = vcmp.eq.s32.totalorder %v196, 1
        %vm205 = vcmp.eq.s32.totalorder %v197, 1
        %vm206 = vcmp.eq.s32.totalorder %v198, 1
        %vm207 = vcmp.eq.s32.totalorder %v199, 1
        %v208 = vsel %vm191, 1, 0
        %vm209 = vcmp.eq.s32.totalorder %v208, 1
        %vm210 = vmand %vm200, %vm209
        %vm211 = vmand %vm201, %vm209
        %vm212 = vmand %vm202, %vm209
        %vm213 = vmand %vm203, %vm209
        %vm214 = vmand %vm204, %vm209
        %vm215 = vmand %vm205, %vm209
        %vm216 = vmand %vm206, %vm209
        %vm217 = vmand %vm207, %vm209
        %s218 = sadd.s32 %s151, 4
        %s219 = sld [smem:[#allocation3 + %s218]]
        %s220 = sadd.s32 %s151, 5
        %s221 = sld [smem:[#allocation3 + %s220]]
        %s222 = sadd.s32 %s151, 6
        %s223 = sld [smem:[#allocation3 + %s222]]
        %s224 = sadd.s32 %s151, 7
        %s225 = sld [smem:[#allocation3 + %s224]]
        %v226 = vstv %s219
        %vm227 = vcmp.ge.s32.totalorder %v141, %v226
        %vm228 = vcmp.ge.s32.totalorder %v142, %v226
        %vm229 = vcmp.ge.s32.totalorder %v143, %v226
        %vm230 = vcmp.ge.s32.totalorder %v144, %v226
        %vm231 = vcmp.ge.s32.totalorder %v145, %v226
        %vm232 = vcmp.ge.s32.totalorder %v146, %v226
        %vm233 = vcmp.ge.s32.totalorder %v147, %v226
        %vm234 = vcmp.ge.s32.totalorder %v148, %v226
        %s235 = sadd.s32 %s219, %s221
        %v236 = vstv %s235
        %vm237 = vcmp.lt.s32.totalorder %v141, %v236
        %vm238 = vcmp.lt.s32.totalorder %v142, %v236
        %vm239 = vcmp.lt.s32.totalorder %v143, %v236
        %vm240 = vcmp.lt.s32.totalorder %v144, %v236
        %vm241 = vcmp.lt.s32.totalorder %v145, %v236
        %vm242 = vcmp.lt.s32.totalorder %v146, %v236
        %vm243 = vcmp.lt.s32.totalorder %v147, %v236
        %vm244 = vcmp.lt.s32.totalorder %v148, %v236
        %vm245 = vmand %vm227, %vm237
        %vm246 = vmand %vm228, %vm238
        %vm247 = vmand %vm229, %vm239
        %vm248 = vmand %vm230, %vm240
        %vm249 = vmand %vm231, %vm241
        %vm250 = vmand %vm232, %vm242
        %vm251 = vmand %vm233, %vm243
        %vm252 = vmand %vm234, %vm244
        %v253 = vstv %s223
        %vm254 = vcmp.ge.s32.totalorder %v150, %v253
        %s255 = sadd.s32 %s223, %s225
        %v256 = vstv %s255
        %vm257 = vcmp.lt.s32.totalorder %v150, %v256
        %vm258 = vmand %vm254, %vm257
        %v259 = vsel %vm245, 1, 0
        %v260 = vsel %vm246, 1, 0
        %v261 = vsel %vm247, 1, 0
        %v262 = vsel %vm248, 1, 0
        %v263 = vsel %vm249, 1, 0
        %v264 = vsel %vm250, 1, 0
        %v265 = vsel %vm251, 1, 0
        %v266 = vsel %vm252, 1, 0
        %vm267 = vcmp.eq.s32.totalorder %v259, 1
        %vm268 = vcmp.eq.s32.totalorder %v260, 1
        %vm269 = vcmp.eq.s32.totalorder %v261, 1
        %vm270 = vcmp.eq.s32.totalorder %v262, 1
        %vm271 = vcmp.eq.s32.totalorder %v263, 1
        %vm272 = vcmp.eq.s32.totalorder %v264, 1
        %vm273 = vcmp.eq.s32.totalorder %v265, 1
        %vm274 = vcmp.eq.s32.totalorder %v266, 1
        %v275 = vsel %vm258, 1, 0
        %vm276 = vcmp.eq.s32.totalorder %v275, 1
        %vm277 = vmand %vm267, %vm276
        %vm278 = vmand %vm268, %vm276
        %vm279 = vmand %vm269, %vm276
        %vm280 = vmand %vm270, %vm276
        %vm281 = vmand %vm271, %vm276
        %vm282 = vmand %vm272, %vm276
        %vm283 = vmand %vm273, %vm276
        %vm284 = vmand %vm274, %vm276
        %vm285 = vmor %vm210, %vm277
        %vm286 = vmor %vm211, %vm278
        %vm287 = vmor %vm212, %vm279
        %vm288 = vmor %vm213, %vm280
        %vm289 = vmor %vm214, %vm281
        %vm290 = vmor %vm215, %vm282
        %vm291 = vmor %vm216, %vm283
        %vm292 = vmor %vm217, %vm284
        %v293 = vld [vmem:[%s121] sm:$0xff]
        %v294 = vld [vmem:[%s121 + $0x8] sm:$0xff]
        %v295 = vld [vmem:[%s121 + $0x10] sm:$0xff]
        %v296 = vld [vmem:[%s121 + $0x18] sm:$0xff]
        %v297 = vld [vmem:[%s121 + $0x20] sm:$0xff]
        %v298 = vld [vmem:[%s121 + $0x28] sm:$0xff]
        %v299 = vld [vmem:[%s121 + $0x30] sm:$0xff]
        %v300 = vld [vmem:[%s121 + $0x38] sm:$0xff]
        %v301 = vsel %vm285, 0.0, %v293
        %v302 = vsel %vm286, 0.0, %v294
        %v303 = vsel %vm287, 0.0, %v295
        %v304 = vsel %vm288, 0.0, %v296
        %v305 = vsel %vm289, 0.0, %v297
        %v306 = vsel %vm290, 0.0, %v298
        %v307 = vsel %vm291, 0.0, %v299
        %v308 = vsel %vm292, 0.0, %v300
        %309 = vst [vmem:[%s139] sm:$0xff] %v301
        %310 = vst [vmem:[%s139 + $0x8] sm:$0xff] %v302
        %311 = vst [vmem:[%s139 + $0x10] sm:$0xff] %v303
        %312 = vst [vmem:[%s139 + $0x18] sm:$0xff] %v304
        %313 = vst [vmem:[%s139 + $0x20] sm:$0xff] %v305
        %314 = vst [vmem:[%s139 + $0x28] sm:$0xff] %v306
        %315 = vst [vmem:[%s139 + $0x30] sm:$0xff] %v307
        %316 = vst [vmem:[%s139 + $0x38] sm:$0xff] %v308
        %s317 = sand.u32 %s57, 1
        %s318 = scalar_lea.sflag [#allocation6], %s317
        %s319 = sand.u32 %s57, 1
        %s320 = smul.addr %s319, 64
        %s321 = scalar_lea.vmem [#allocation7], %s320
        // Predicated region
        $region29: #{tpu_custom_call.1} parent=23 // pred_check
          %p322 = pneg %p67
        $region30: #{tpu_custom_call.1} parent=23 // pred_check_branch
          %324 = sbr.rel (%p322) target = $region32
        $region31: #{tpu_custom_call.1} parent=23 // pred_region
          %s326 = ssub.s32 1024, 1024
          %327 = vsyncadd %s318, %s326
          %s328 = smul.addr %s23, 8
          %s329 = smul.addr %s328, 128
          %s330 = scalar_lea.hbm %s2, %s329
          %s331 = sshll.u32 %s321, 4
          %s332 = int_to_ptr.vmem [resolvable:$true] %s331
          %337 = dma.vmem_to_hbm [thread:$0]  %s332, 1024, %s330, %s318, 128, 128, 8
        $region32: #{tpu_custom_call.1} parent=23 // pred_fallthru
          _
      $region24: #{tpu_custom_call.1} parent=5 // pred_fallthru
        _
      %p338 = scmp.le.s32.totalorder 2, %s18
      // Predicated region
      $region33: #{tpu_custom_call.1} parent=5 // pred_check
        %p339 = pneg %p338
      $region34: #{tpu_custom_call.1} parent=5 // pred_check_branch
        %341 = sbr.rel (%p339) target = $region36
      $region35: #{tpu_custom_call.1} parent=5 // pred_region
        %s342 = ssub.s32 %s18, 2
        // Predicated region
        $region37: #{tpu_custom_call.1} parent=35 // pred_check
          %p343 = pneg %p73
        $region38: #{tpu_custom_call.1} parent=35 // pred_check_branch
          %345 = sbr.rel (%p343) target = $region40
        $region39: #{tpu_custom_call.1} parent=35 // pred_region
          %s346 = sand.u32 %s58, 1
          %s347 = scalar_lea.sflag [#allocation6], %s346
          %s348 = sand.u32 %s58, 1
          %s349 = smul.addr %s348, 64
          %s350 = scalar_lea.vmem [#allocation7], %s349
          %351 = dma.done %s347, 1024
        $region40: #{tpu_custom_call.1} parent=35 // pred_fallthru
          _
      $region36: #{tpu_custom_call.1} parent=5 // pred_fallthru
        _
    $region6: #{tpu_custom_call.1} parent=1 // loop_footer
      %s22 = sadd.s32 1, %s18
    $region7: #{tpu_custom_call.1} parent=1 // loop_footer_branch
      %17 = sbr.rel target = $region3
    $region8: #{tpu_custom_call.1} parent=1 // loop_exit
      _
    %352 = vsyncpa [#allocation5], 1
    %s353 = scalar_lea.sflag [#allocation5], 1
    %354 = vsyncpa %s353, 1
    %355 = vsyncpa [#allocation6], 1
    %s356 = scalar_lea.sflag [#allocation6], 1
    %357 = vsyncpa %s356, 1

</llo_original>
